<compile_context>
chip_gen: v7x
topology: tpu7x:2x2x1
jax: 0.10.0
libtpu: 0.0.40
codegen_flags: <defaults>
</compile_context>

<pallas_src>
import functools

import jax
import jax.numpy as jnp
from jax import lax
from jax.experimental import pallas as pl
from jax.experimental.pallas import tpu as pltpu

LANE = 128
SUBLANE = 8
_F32_TEMP_TILES = 8  # acc, f0, f1, fa, fb, ft, avg, mask live at once (worst case)


def _round_up(x, m):
    return -(-x // m) * m


def _cdiv(a, b):
    return -(-a // b)


# ---------------------------------------------------------------------------
# Generation-aware VMEM sizing.
# ---------------------------------------------------------------------------
def _vmem_plan():
    """Returns (vmem_limit_bytes, resident_budget_bytes) sized per chip."""
    cap = 64 << 20  # conservative fallback: v7x per-TC physical VMEM
    try:
        info = pltpu.get_tpu_info()
        cap_attr = getattr(info, "vmem_capacity_bytes", None)
        if cap_attr:
            cap = int(cap_attr)
    except Exception:
        pass
    # Leave headroom under physical for compiler scratch, and budget the
    # resident blocks + f32 temporaries at ~2/3 of that explicit limit.
    limit = min(cap * 3 // 4, 96 << 20)   # v7x: 48 MiB; v5e/v6e: 96 MiB
    budget = limit * 2 // 3               # v7x: 32 MiB; v5e/v6e: 64 MiB
    return limit, budget


# ---------------------------------------------------------------------------
# Shared kernel body: one sweep over the T frame tiles.
# Accumulates the temporal sum and captures the boundary frames on the way
# (no redundant re-loads of frames 0, 1, T-2, T-1).
# ---------------------------------------------------------------------------
def _accumulate_and_boundaries(frames_ref, T):
    f0 = frames_ref[0].astype(jnp.float32)
    acc = f0
    f1 = fa = fb = None
    for t in range(1, T):
        ft = frames_ref[t].astype(jnp.float32)
        acc = acc + ft
        if t == 1:
            f1 = ft
        if t == T - 2:
            fa = ft
        if t == T - 1:
            fb = ft
    return acc, f0, f1, fa, fb


# ---------------------------------------------------------------------------
# Fused fast path: whole stack resident in VMEM, single invocation.
# ---------------------------------------------------------------------------
def _fused_kernel(frames_ref, out_ref, *, threshold, T):
    acc, f0, f1, fa, fb = _accumulate_and_boundaries(frames_ref, T)
    avg = acc / jnp.float32(T)
    d0 = jnp.abs(f1 - f0)
    mask = (d0 / jnp.max(d0)) > threshold          # divide-then-compare (torch-exact)
    if T > 2:
        d1 = jnp.abs(fb - fa)
        mask = jnp.logical_or(mask, (d1 / jnp.max(d1)) > threshold)
    out_ref[...] = jnp.where(mask, fb, avg).astype(out_ref.dtype)


# ---------------------------------------------------------------------------
# Streaming pass 1: global max of |frame[b] - frame[a]| for the boundary pairs.
# ---------------------------------------------------------------------------
def _pass1_plan(T):
    """Contiguous frame segments covering the boundary pairs (deduped), plus
    per-pair (segment_index, offset_in_segment) locations."""
    if T <= 4:
        segs = [(0, T)]                       # boundary set == all frames
    elif T % 2 == 0:
        segs = [(0, 2), (T - 2, 2)]
    else:
        segs = [(0, 2), (T - 2, 1), (T - 1, 1)]
    pairs = [(0, 1)] + ([(T - 2, T - 1)] if T > 2 else [])

    def locate(f):
        for si, (s, l) in enumerate(segs):
            if s <= f < s + l:
                return si, f - s
        raise AssertionError(f)

    pair_locs = [(locate(a), locate(b)) for a, b in pairs]
    return segs, pair_locs


def _seg_spec(block_index, length, tr):
    return pl.BlockSpec((length, tr, LANE), lambda i: (block_index, i, 0))


def _max_reduce_kernel(*refs, pair_locs, rows, tr):
    # refs = (seg_ref_0[, seg_ref_1[, seg_ref_2]], out_ref)
    #   seg_ref : (len, TR, LANE) VMEM tile of contiguous frames
    #   out_ref : (2,) f32 SMEM, resident across the grid (running max)
    out_ref = refs[-1]
    seg_refs = refs[:-1]

    @pl.when(pl.program_id(0) == 0)
    def _init():
        out_ref[0] = jnp.float32(0.0)
        out_ref[1] = jnp.float32(0.0)

    # Rows of the last (partial) tile past `rows` hold unspecified data; mask
    # them so garbage cannot inflate the global max.
    needs_mask = (rows % tr) != 0
    if needs_mask:
        row0 = pl.program_id(0) * tr
        row_ids = lax.broadcasted_iota(jnp.int32, (tr, LANE), 0) + row0
        valid = row_ids < rows

    loaded = {}

    def get(loc):
        if loc not in loaded:
            si, off = loc
            loaded[loc] = seg_refs[si][off].astype(jnp.float32)
        return loaded[loc]

    for p, (loc_a, loc_b) in enumerate(pair_locs):
        d = jnp.abs(get(loc_b) - get(loc_a))      # >= 0, so 0-init is safe
        if needs_mask:
            d = jnp.where(valid, d, 0.0)
        out_ref[p] = jnp.maximum(out_ref[p], jnp.max(d))


# ---------------------------------------------------------------------------
# Streaming pass 2: per-tile temporal mean + afterimage mask + select.
# ---------------------------------------------------------------------------
def _select_kernel(maxes_ref, frames_ref, out_ref, *, threshold, T):
    # maxes_ref : (2,) f32 SMEM — global max of the two frame-pair diffs
    # frames_ref: (T, TR, LANE) VMEM tile of the frame stack
    # out_ref   : (TR, LANE) VMEM tile of the output
    acc, f0, f1, fa, fb = _accumulate_and_boundaries(frames_ref, T)
    avg = acc / jnp.float32(T)
    # Divide-then-compare kept for bit-exactness with torch (incl. max==0 -> NaN);
    # the scalar divide is fully hidden under HBM DMA in this mem-bound kernel.
    mask = (jnp.abs(f1 - f0) / maxes_ref[0]) > threshold
    if T > 2:
        mask = jnp.logical_or(mask, (jnp.abs(fb - fa) / maxes_ref[1]) > threshold)
    # Out-of-bounds rows of the last partial tile compute garbage here, but the
    # writeback of those rows is masked by the blocked out_spec.
    out_ref[...] = jnp.where(mask, fb, avg).astype(out_ref.dtype)


def _nr3d_streaming(slab, threshold, T, rows, itemsize, limit, budget):
    # Tile plan: near-equal tiles (target 512 rows), rounded up to the sublane
    # multiple — the last tile is partial (at most 7 OOB rows), rows are never
    # rounded up to a multiple of TR.
    per_row = (2 * T + 2) * LANE * itemsize + _F32_TEMP_TILES * LANE * 4
    tr_cap = max(SUBLANE, (budget // per_row) // SUBLANE * SUBLANE)
    target = min(512, tr_cap)
    num_tiles = _cdiv(rows, target)
    tr = _round_up(_cdiv(rows, num_tiles), SUBLANE)
    grid = (_cdiv(rows, tr),)

    # ---- Pass 1: global max of the boundary frame-pair diffs -> (2,) f32 SMEM.
    segs, pair_locs = _pass1_plan(T)
    n_seg_frames = sum(l for _, l in segs)
    in_specs = []
    for (s, l) in segs:
        assert s % l == 0
        in_specs.append(_seg_spec(s // l, l, tr))

    maxes = pl.pallas_call(
        functools.partial(_max_reduce_kernel, pair_locs=pair_locs, rows=rows, tr=tr),
        out_shape=jax.ShapeDtypeStruct((2,), jnp.float32),
        grid=grid,
        in_specs=in_specs,
        out_specs=pl.BlockSpec(memory_space=pltpu.MemorySpace.SMEM),
        compiler_params=pltpu.CompilerParams(
            # NOTE: must stay "arbitrary" — the (2,) SMEM output is a running-max
            # accumulator resident across the whole grid.
            dimension_semantics=("arbitrary",),
            vmem_limit_bytes=limit),
        cost_estimate=pl.CostEstimate(
            flops=4 * n_seg_frames * rows * LANE,
            transcendentals=0,
            bytes_accessed=n_seg_frames * rows * LANE * itemsize + 8),
    )(*([slab] * len(segs)))

    # ---- Pass 2: mean + mask + select, streamed over spatial tiles.
    out_slab = pl.pallas_call(
        functools.partial(_select_kernel, threshold=float(threshold), T=T),
        out_shape=jax.ShapeDtypeStruct((rows, LANE), slab.dtype),
        grid=grid,
        in_specs=[
            pl.BlockSpec(memory_space=pltpu.MemorySpace.SMEM),   # maxes (2,)
            pl.BlockSpec((T, tr, LANE), lambda i: (0, i, 0)),    # frame-stack tile
        ],
        out_specs=pl.BlockSpec((tr, LANE), lambda i: (i, 0)),
        compiler_params=pltpu.CompilerParams(
            dimension_semantics=("parallel",),
            vmem_limit_bytes=limit),
        cost_estimate=pl.CostEstimate(
            flops=(T + 10) * rows * LANE,
            transcendentals=0,
            bytes_accessed=(T + 1) * rows * LANE * itemsize),
    )(maxes, slab)
    return out_slab


# ---------------------------------------------------------------------------
# Wrapper
# ---------------------------------------------------------------------------
def nr3d_forward(frames: jax.Array, threshold: float, *,
                 _force_streaming: bool = False) -> jax.Array:
    """frames: (T, C, H, W). Returns (1, C, H, W), matching torch broadcasting."""
    T, C, H, W = frames.shape
    assert T >= 2, "NR3D needs at least two frames"
    D = C * H * W
    itemsize = jnp.dtype(frames.dtype).itemsize
    rows = _cdiv(D, LANE)
    Dp = rows * LANE

    flat = frames.reshape(T, D)
    if Dp != D:
        # TODO(synk): ragged lane tail handled with a (small, <128-elem/frame)
        # pad; could be moved in-kernel with lane masks to avoid the extra copy.
        flat = jnp.pad(flat, ((0, 0), (0, Dp - D)))
    slab = flat.reshape(T, rows, LANE)   # lane-dense, no row padding

    limit, budget = _vmem_plan()

    # Fused fast path: whole stack + f32 temporaries resident in VMEM.
    fused_bytes = ((T + 1) * rows * LANE * itemsize
                   + _F32_TEMP_TILES * rows * LANE * 4)
    if fused_bytes <= budget and not _force_streaming:
        out_slab = pl.pallas_call(
            functools.partial(_fused_kernel, threshold=float(threshold), T=T),
            out_shape=jax.ShapeDtypeStruct((rows, LANE), frames.dtype),
            compiler_params=pltpu.CompilerParams(vmem_limit_bytes=limit),
            cost_estimate=pl.CostEstimate(
                flops=(T + 12) * rows * LANE,
                transcendentals=0,
                bytes_accessed=(T + 1) * rows * LANE * itemsize),
        )(slab)
    else:
        out_slab = _nr3d_streaming(slab, threshold, T, rows, itemsize,
                                   limit, budget)

    out = out_slab.reshape(Dp)
    if Dp != D:
        out = out[:D]
    return out.reshape(1, C, H, W)


# ---------------------------------------------------------------------------
# Pure-JAX reference mirroring the torch code (fresh-module semantics).
# ---------------------------------------------------------------------------
def _nr3d_reference(frames: jax.Array, threshold: float) -> jax.Array:
    T = frames.shape[0]
    f = frames.astype(jnp.float32)
    avg = jnp.mean(f, axis=0, keepdims=True)
    d0 = jnp.abs(f[1] - f[0])
    d0 = d0 / jnp.max(d0)
    mask = d0 > threshold
    if T > 2:
        d1 = jnp.abs(f[T - 1] - f[T - 2])
        d1 = d1 / jnp.max(d1)
        mask = jnp.logical_or(mask, d1 > threshold)
    out = jnp.where(mask, f[T - 1], avg)
    return out.astype(frames.dtype)


if __name__ == "__main__":
    key = jax.random.PRNGKey(0)
    threshold = 0.5
    k1, k2 = jax.random.split(key)

    # Primary small case (fused fast path).
    T, C, H, W = 4, 4, 16, 16
    frames = jax.random.uniform(k1, (T, C, H, W), dtype=jnp.float32)
    out = jax.block_until_ready(nr3d_forward(frames, threshold))
    ref = _nr3d_reference(frames, threshold)
    assert out.shape == (1, C, H, W), out.shape
    assert jnp.allclose(out, ref, atol=1e-5, rtol=1e-5), "mismatch vs reference (small/fused)"

    # Larger case: fused path, then the forced streaming path (multi-tile grid,
    # partial last tile -> exercises the in-kernel OOB-row masking and SMEM max).
    T2, C2, H2, W2 = 3, 3, 160, 160
    frames2 = jax.random.uniform(k2, (T2, C2, H2, W2), dtype=jnp.float32)
    ref2 = _nr3d_reference(frames2, threshold)

    out2 = jax.block_until_ready(nr3d_forward(frames2, threshold))
    assert out2.shape == (1, C2, H2, W2), out2.shape
    assert jnp.allclose(out2, ref2, atol=1e-5, rtol=1e-5), "mismatch vs reference (large/fused)"

    out3 = jax.block_until_ready(nr3d_forward(frames2, threshold, _force_streaming=True))
    assert out3.shape == (1, C2, H2, W2), out3.shape
    assert jnp.allclose(out3, ref2, atol=1e-5, rtol=1e-5), "mismatch vs reference (streaming)"

    print("KERNEL_OK")
</pallas_src>

<mosaic_0001>
module attributes {stable_mosaic.version = 11 : i64} {
  func.func @_fused_kernel(%arg0: memref<4x8x128xf32, #tpu.memory_space<vmem>>, %arg1: memref<8x128xf32, #tpu.memory_space<vmem>>) attributes {dimension_semantics = [], scalar_prefetch = 0 : i64, scratch_operands = 0 : i64, tpu.core_type = #tpu.core_type<tc>} {
    %c0 = arith.constant 0 : index
    %c0_0 = arith.constant 0 : index
    %c0_1 = arith.constant 0 : index
    %0 = vector.load %arg0[%c0, %c0_0, %c0_1] : memref<4x8x128xf32, #tpu.memory_space<vmem>>, vector<1x8x128xf32>
    %1 = vector.shape_cast %0 : vector<1x8x128xf32> to vector<8x128xf32>
    %c1 = arith.constant 1 : index
    %c0_2 = arith.constant 0 : index
    %c0_3 = arith.constant 0 : index
    %2 = vector.load %arg0[%c1, %c0_2, %c0_3] : memref<4x8x128xf32, #tpu.memory_space<vmem>>, vector<1x8x128xf32>
    %3 = vector.shape_cast %2 : vector<1x8x128xf32> to vector<8x128xf32>
    %4 = arith.addf %1, %3 : vector<8x128xf32>
    %c2 = arith.constant 2 : index
    %c0_4 = arith.constant 0 : index
    %c0_5 = arith.constant 0 : index
    %5 = vector.load %arg0[%c2, %c0_4, %c0_5] : memref<4x8x128xf32, #tpu.memory_space<vmem>>, vector<1x8x128xf32>
    %6 = vector.shape_cast %5 : vector<1x8x128xf32> to vector<8x128xf32>
    %7 = arith.addf %4, %6 : vector<8x128xf32>
    %c3 = arith.constant 3 : index
    %c0_6 = arith.constant 0 : index
    %c0_7 = arith.constant 0 : index
    %8 = vector.load %arg0[%c3, %c0_6, %c0_7] : memref<4x8x128xf32, #tpu.memory_space<vmem>>, vector<1x8x128xf32>
    %9 = vector.shape_cast %8 : vector<1x8x128xf32> to vector<8x128xf32>
    %10 = arith.addf %7, %9 : vector<8x128xf32>
    %cst = arith.constant 4.000000e+00 : f32
    %11 = vector.broadcast %cst : f32 to vector<8x128xf32>
    %12 = arith.divf %10, %11 : vector<8x128xf32>
    %13 = arith.subf %3, %1 : vector<8x128xf32>
    %14 = math.absf %13 : vector<8x128xf32>
    %15 = vector.shape_cast %14 : vector<8x128xf32> to vector<1x8x128xf32>
    %cst_8 = arith.constant dense<0xFF800000> : vector<1xf32>
    %16 = vector.multi_reduction <maximumf>, %15, %cst_8 [1, 2] : vector<1x8x128xf32> to vector<1xf32>
    %17 = vector.shape_cast %16 : vector<1xf32> to vector<1x1x1xf32>
    %18 = vector.extract %17[0, 0, 0] : f32 from vector<1x1x1xf32>
    %19 = vector.broadcast %18 : f32 to vector<8x128xf32>
    %20 = arith.divf %14, %19 : vector<8x128xf32>
    %cst_9 = arith.constant 5.000000e-01 : f32
    %21 = vector.broadcast %cst_9 : f32 to vector<8x128xf32>
    %22 = arith.cmpf ogt, %20, %21 : vector<8x128xf32>
    %23 = arith.subf %9, %6 : vector<8x128xf32>
    %24 = math.absf %23 : vector<8x128xf32>
    %25 = vector.shape_cast %24 : vector<8x128xf32> to vector<1x8x128xf32>
    %cst_10 = arith.constant dense<0xFF800000> : vector<1xf32>
    %26 = vector.multi_reduction <maximumf>, %25, %cst_10 [1, 2] : vector<1x8x128xf32> to vector<1xf32>
    %27 = vector.shape_cast %26 : vector<1xf32> to vector<1x1x1xf32>
    %28 = vector.extract %27[0, 0, 0] : f32 from vector<1x1x1xf32>
    %29 = vector.broadcast %28 : f32 to vector<8x128xf32>
    %30 = arith.divf %24, %29 : vector<8x128xf32>
    %cst_11 = arith.constant 5.000000e-01 : f32
    %31 = vector.broadcast %cst_11 : f32 to vector<8x128xf32>
    %32 = arith.cmpf ogt, %30, %31 : vector<8x128xf32>
    %33 = arith.ori %22, %32 : vector<8x128xi1>
    %34 = arith.select %33, %9, %12 : vector<8x128xi1>, vector<8x128xf32>
    %c0_12 = arith.constant 0 : index
    %c0_13 = arith.constant 0 : index
    %35 = vector.load %arg1[%c0_12, %c0_13] : memref<8x128xf32, #tpu.memory_space<vmem>>, vector<8x128xf32>
    tpu.vector_store %arg1[%c0_12, %c0_13], %34 {strides = array<i32>} : memref<8x128xf32, #tpu.memory_space<vmem>>, vector<8x128xf32>,
    return
  }
}

</mosaic_0001>

<llo_original>
// kernel: tpu_custom_call.1
$region0: #{tpu_custom_call.1}
  #allocation0 [shape = 'u32[]', space=smem, size = 0x4, offset = 0x4, fixed_abs, tag = 'smem constant byte address 0x4 - core index']
  #allocation1 [shape = 'u32[144,128]{1,0:T(1,128)}', space=vmem, size = 0x12000, scoped, tag = 'internal scratch']
  %s0 = inlined_call_operand.hbm [shape: f32[4,8,128], index: 0, kind: input, shape index: {}]
  %s1 = inlined_call_operand.hbm [shape: f32[8,128], index: 1, kind: output, shape index: {}]
  %s2 = sld [smem:[#allocation0]]
  $region18: #{tpu_custom_call.1} parent=0
    _
  %s4 = ssub.s32 1, %s2
  %s5 = scalar_select 0, %s4, %s2
  $region1: #{tpu_custom_call.1} parent=0
    #allocation2 [shape = 'u8[16384]{0}', space=vmem, size = 0x4000, scoped, tag = 'input window, operand 0, single buffered']
    #allocation3 [shape = 's32[1]{0}', space=sflag, size = 0x4, scoped, tag = 'scoped memory for tpu_custom_call.1']
    #allocation4 [shape = 's32[1]{0}', space=sflag, size = 0x4, scoped, tag = 'scoped memory for tpu_custom_call.1']
    #allocation5 [shape = 'u8[4096]{0}', space=vmem, size = 0x1000, scoped, tag = 'output window, operand 0, single buffered']
    %6 = vsyncpa [#allocation3], 0
    %7 = vsyncpa [#allocation4], 0
    // Predicated region
    $region2: #{tpu_custom_call.1} parent=1 // pred_check
      _
    $region3: #{tpu_custom_call.1} parent=1 // pred_check_branch
      %9 = sbr.rel (0) target = $region5
    $region4: #{tpu_custom_call.1} parent=1 // pred_region
      %s11 = ssub.s32 512, 512
      %12 = vsyncadd [#allocation3], %s11
      %s13 = sshll.u32 [#allocation2], 4
      %s14 = int_to_ptr.vmem [resolvable:$true] %s13
      %19 = dma.hbm_to_vmem [thread:$0]  %s0, 512, %s14, [#allocation3], 128, 128, 8
    $region5: #{tpu_custom_call.1} parent=1 // pred_fallthru
      _
    // Predicated region
    $region6: #{tpu_custom_call.1} parent=1 // pred_check
      _
    $region7: #{tpu_custom_call.1} parent=1 // pred_check_branch
      %21 = sbr.rel (0) target = $region9
    $region8: #{tpu_custom_call.1} parent=1 // pred_region
      %22 = dma.done [#allocation3], 512
    $region9: #{tpu_custom_call.1} parent=1 // pred_fallthru
      _
    %v23 = vld [vmem:[#allocation2] sm:$0xff]
    %s24 = scalar_lea.vmem [#allocation2], 8
    %v25 = vld [vmem:[%s24] sm:$0xff]
    %v26 = vadd.f32 %v23, %v25
    %s27 = scalar_lea.vmem [#allocation2], 16
    %v28 = vld [vmem:[%s27] sm:$0xff]
    %v29 = vadd.f32 %v26, %v28
    %s30 = scalar_lea.vmem [#allocation2], 24
    %v31 = vld [vmem:[%s30] sm:$0xff]
    %v32 = vadd.f32 %v29, %v31
    %v33 = vrcp.pop 4.0
    %v34 = vmul.f32 %v32, %v33
    %v35 = vsub.f32 %v25, %v23
    %v36 = vand.u32 2147483647, %v35
    %37 = vmax.xlane.f32.xlu0 %v36
    %v38 = vpop.xlane.xlu0 %37
    %v39 = vrot.slane %v38, 4
    %v40 = vmax.f32 %v38, %v39
    %v41 = vrot.slane %v40, 2
    %v42 = vmax.f32 %v40, %v41
    %v43 = vrot.slane %v42, 1
    %v44 = vmax.f32 %v42, %v43
    %s45 = vtos %v44
    %v46 = vstv %s45
    %v47 = vrcp.pop %v46
    %v48 = vmul.f32 %v36, %v47
    %vm49 = vcmp.gt.f32.partialorder %v48, 0.5
    %v50 = vsub.f32 %v31, %v28
    %v51 = vand.u32 2147483647, %v50
    %52 = vmax.xlane.f32.xlu0 %v51
    %v53 = vpop.xlane.xlu0 %52
    %v54 = vrot.slane %v53, 4
    %v55 = vmax.f32 %v53, %v54
    %v56 = vrot.slane %v55, 2
    %v57 = vmax.f32 %v55, %v56
    %v58 = vrot.slane %v57, 1
    %v59 = vmax.f32 %v57, %v58
    %s60 = vtos %v59
    %v61 = vstv %s60
    %v62 = vrcp.pop %v61
    %v63 = vmul.f32 %v51, %v62
    %vm64 = vcmp.gt.f32.partialorder %v63, 0.5
    %vm65 = vmor %vm49, %vm64
    %v66 = vsel %vm65, %v31, %v34
    %67 = vst [vmem:[#allocation5] sm:$0xff] %v66
    // Predicated region
    $region10: #{tpu_custom_call.1} parent=1 // pred_check
      _
    $region11: #{tpu_custom_call.1} parent=1 // pred_check_branch
      %69 = sbr.rel (0) target = $region13
    $region12: #{tpu_custom_call.1} parent=1 // pred_region
      %s71 = ssub.s32 128, 128
      %72 = vsyncadd [#allocation4], %s71
      %s74 = sshll.u32 [#allocation5], 4
      %s75 = int_to_ptr.vmem [resolvable:$true] %s74
      %77 = dma.vmem_to_hbm [thread:$0]  %s75, 128, %s1, [#allocation4]
    $region13: #{tpu_custom_call.1} parent=1 // pred_fallthru
      _
    // Predicated region
    $region14: #{tpu_custom_call.1} parent=1 // pred_check
      _
    $region15: #{tpu_custom_call.1} parent=1 // pred_check_branch
      %79 = sbr.rel (0) target = $region17
    $region16: #{tpu_custom_call.1} parent=1 // pred_region
      %80 = dma.done [#allocation4], 128
    $region17: #{tpu_custom_call.1} parent=1 // pred_fallthru
      _
    %81 = vsyncpa [#allocation3], 1
    %82 = vsyncpa [#allocation4], 1

</llo_original>
